<compile_context>
chip_gen: v6e
topology: v6e:2x2x1
jax: 0.10.0
libtpu: 0.0.40
codegen_flags: <defaults>
</compile_context>

<pallas_src>
import math
import functools

import jax
import jax.numpy as jnp
from jax.experimental import pallas as pl
from jax.experimental.pallas import tpu as pltpu


# ----------------------------------------------------------------------------
# Generation-aware VMEM policy
# ----------------------------------------------------------------------------
def _vmem_capacity_bytes():
    try:
        return int(pltpu.get_tpu_info().vmem_capacity_bytes)
    except Exception:
        return 64 << 20  # conservative fallback (v7x per-TC VMEM)


def _vmem_policy():
    cap = _vmem_capacity_bytes()
    if cap >= (100 << 20):           # v5e / v6e: 128 MiB physical VMEM
        return 64 << 20, 48 << 20    # (vmem_limit_bytes, tile-pick budget)
    # v7x: 64 MiB per TensorCore -- keep headroom so double-buffering survives.
    return 40 << 20, 22 << 20


def _pick_tile(hw, dbuf_bytes_per_col, budget_bytes, max_tile=None):
    """Largest lane-dense spatial tile whose double-buffered blocks fit budget."""
    t_cap = max(budget_bytes, 1 << 20) // max(dbuf_bytes_per_col, 1)
    if max_tile is not None:
        t_cap = min(t_cap, max_tile)
    if t_cap >= hw or hw <= 128:
        return hw                                   # full-extent block
    return int(max(128, (min(t_cap, 16384) // 128) * 128))


# ----------------------------------------------------------------------------
# Wrapper
# ----------------------------------------------------------------------------
@functools.partial(jax.jit,
                   static_argnames=("eps", "use_bf16_matmul", "max_tile_hw"))
def transfer_conv_forward(x_nchw, weight, gamma, beta, *, eps=1e-5,
                          use_bf16_matmul=False, max_tile_hw=None):
    """Forward pass of transfer_conv.

    x_nchw : (N, Cin, H, W) float32
    weight : (Cout, Cin) or (Cout, Cin, 1, 1) float32 (1x1 conv weight, no bias)
    gamma  : (Cout,) float32 -- BN weight
    beta   : (Cout,) float32 -- BN bias
    Returns: (N, Cout, H, W) float32
    """
    N, Cin, H, W = x_nchw.shape
    Cout = weight.shape[0]
    HW = H * W
    M = N * HW  # pixels entering the BN statistic

    # Pure reshapes, no transposes: pixels live on the lane axis.
    x = x_nchw.reshape(N, Cin, HW).astype(jnp.float32)
    w = weight.reshape(Cout, Cin).astype(jnp.float32)

    vmem_limit, budget = _vmem_policy()

    # ---------------- Pass 1: x-only moments (sum + Gram matrix) -------------
    # Working set: double-buffered (Cin, t1) input + fixed (Cin,1)/(Cin,Cin) out.
    extra1 = 2 * 4 * (Cin * Cin + Cin)
    t1 = _pick_tile(HW, 2 * 4 * Cin, budget - extra1, max_tile_hw)
    nt1 = pl.cdiv(HW, t1)
    nc = 2 if nt1 >= 2 else 1          # megacore-parallel chunks (v7x: 2 TCs)
    tpc = pl.cdiv(nt1, nc)
    # Mask only if the last tile is ragged or a chunk overshoots (odd nt1).
    need_mask = (nt1 * t1 != HW) or (nc * tpc != nt1)

    def stats_kernel(x_ref, s_ref, g_ref):
        j = pl.program_id(2)

        @pl.when(j == 0)
        def _():
            s_ref[...] = jnp.zeros_like(s_ref)
            g_ref[...] = jnp.zeros_like(g_ref)

        xt = x_ref[...]
        if need_mask:
            gidx = pl.program_id(1) * tpc + j        # global spatial-tile index
            limit = HW - gidx * t1                   # valid columns in this tile
            col = jax.lax.broadcasted_iota(jnp.int32, xt.shape, 1)
            xt = jnp.where(col < limit, xt, 0.0)
        xm = xt.astype(jnp.bfloat16) if use_bf16_matmul else xt
        s_ref[...] += jnp.sum(xt, axis=-1, keepdims=True)
        # Gram: (Cin, t) x (Cin, t) contracted over t on the MXU -> (Cin, Cin)
        g_ref[...] += jax.lax.dot_general(
            xm, xm, (((1,), (1,)), ((), ())),
            preferred_element_type=jnp.float32)

    # Clamp the block index so an overshooting chunk re-reads the last valid
    # block (its contribution is masked to zero in-kernel).
    x_idx1 = lambda n, c, j: (n, 0, jnp.minimum(c * tpc + j, nt1 - 1))

    csum, gram = pl.pallas_call(
        stats_kernel,
        out_shape=(
            jax.ShapeDtypeStruct((N, nc, Cin, 1), jnp.float32),
            jax.ShapeDtypeStruct((N, nc, Cin, Cin), jnp.float32),
        ),
        grid_spec=pltpu.PrefetchScalarGridSpec(
            num_scalar_prefetch=0,
            grid=(N, nc, tpc),
            in_specs=[pl.BlockSpec((None, Cin, t1), x_idx1)],
            out_specs=[
                pl.BlockSpec((None, None, Cin, 1), lambda n, c, j: (n, c, 0, 0)),
                pl.BlockSpec((None, None, Cin, Cin), lambda n, c, j: (n, c, 0, 0)),
            ],
        ),
        compiler_params=pltpu.CompilerParams(
            dimension_semantics=("parallel", "parallel", "arbitrary"),
            vmem_limit_bytes=vmem_limit,
        ),
    )(x)

    # ---- Tiny glue: finalize BN batch stats, fold affine into w2/bias -------
    s_tot = jnp.sum(csum, axis=(0, 1))                       # (Cin, 1)
    g_tot = jnp.sum(gram, axis=(0, 1))                       # (Cin, Cin)
    mean = jnp.dot(w, s_tot) / float(M)                      # (Cout, 1)
    ey2 = jnp.sum(jnp.dot(w, g_tot) * w, axis=1, keepdims=True) / float(M)
    # Single-pass variance; clamp guards cancellation (see review note).
    var = jnp.maximum(ey2 - mean * mean, 0.0)
    inv = jax.lax.rsqrt(var + eps)
    scale = gamma.reshape(Cout, 1).astype(jnp.float32) * inv
    bias = beta.reshape(Cout, 1).astype(jnp.float32) - mean * scale
    w2 = w * scale                                            # fold BN scale

    # ---------------- Pass 2: fused conv + BN bias + ReLU --------------------
    extra2 = 2 * 4 * (Cout * Cin + Cout)
    t2 = _pick_tile(HW, 2 * 4 * (Cin + Cout), budget - extra2, max_tile_hw)
    nt2 = pl.cdiv(HW, t2)

    def conv_bn_relu_kernel(x_ref, w_ref, b_ref, o_ref):
        xt = x_ref[...]
        wt = w_ref[...]
        if use_bf16_matmul:
            xt = xt.astype(jnp.bfloat16)
            wt = wt.astype(jnp.bfloat16)
        y = jnp.dot(wt, xt, preferred_element_type=jnp.float32)
        # Ragged-edge columns compute garbage but their stores are masked.
        o_ref[...] = jnp.maximum(y + b_ref[...], 0.0)

    out = pl.pallas_call(
        conv_bn_relu_kernel,
        out_shape=jax.ShapeDtypeStruct((N, Cout, HW), jnp.float32),
        grid_spec=pltpu.PrefetchScalarGridSpec(
            num_scalar_prefetch=0,
            grid=(N, nt2),
            in_specs=[
                pl.BlockSpec((None, Cin, t2), lambda n, j: (n, 0, j)),
                pl.BlockSpec((Cout, Cin), lambda n, j: (0, 0)),
                pl.BlockSpec((Cout, 1), lambda n, j: (0, 0)),
            ],
            out_specs=pl.BlockSpec((None, Cout, t2), lambda n, j: (n, 0, j)),
        ),
        compiler_params=pltpu.CompilerParams(
            dimension_semantics=("parallel", "parallel"),
            vmem_limit_bytes=vmem_limit,
        ),
    )(x, w2, bias)

    return out.reshape(N, Cout, H, W)  # pure reshape; already NCHW layout


# ----------------------------------------------------------------------------
# Deterministic parameter init (mirrors the PyTorch __init__)
# ----------------------------------------------------------------------------
def init_params(key, in_feature, out_feature):
    std = math.sqrt(2.0 / (1 * 1 * out_feature))
    weight = std * jax.random.normal(key, (out_feature, in_feature), dtype=jnp.float32)
    gamma = jnp.ones((out_feature,), dtype=jnp.float32)
    beta = jnp.zeros((out_feature,), dtype=jnp.float32)
    return weight, gamma, beta


def _reference(x, weight, gamma, beta, eps=1e-5):
    y = jnp.einsum("nchw,oc->nohw", x, weight)
    mean = jnp.mean(y, axis=(0, 2, 3), keepdims=True)
    var = jnp.mean((y - mean) ** 2, axis=(0, 2, 3), keepdims=True)
    return jnp.maximum(
        (y - mean) * jax.lax.rsqrt(var + eps)
        * gamma.reshape(1, -1, 1, 1) + beta.reshape(1, -1, 1, 1),
        0.0,
    )


if __name__ == "__main__":
    key = jax.random.PRNGKey(0)
    kx, kw, kx2 = jax.random.split(key, 3)

    # --- Main check: small shapes, full-HW blocks (no masking path) ---------
    in_feature, out_feature = 4, 8
    N, H, W = 2, 16, 16
    x = jax.random.normal(kx, (N, in_feature, H, W), dtype=jnp.float32)
    weight, gamma, beta = init_params(kw, in_feature, out_feature)

    out = transfer_conv_forward(x, weight, gamma, beta)
    out = jax.block_until_ready(out)
    ref = _reference(x, weight, gamma, beta)
    assert out.shape == (N, out_feature, H, W)
    assert jnp.max(jnp.abs(out - ref)) < 1e-4

    # --- Stress check: ragged HW (15*15=225) with forced 128-wide tiles, ----
    # --- exercising the in-kernel tail masking, partial output blocks and ---
    # --- the 2-chunk parallel stats split with N == 1. -----------------------
    N2, H2, W2 = 1, 15, 15
    x2 = jax.random.normal(kx2, (N2, in_feature, H2, W2), dtype=jnp.float32)
    out2 = transfer_conv_forward(x2, weight, gamma, beta, max_tile_hw=128)
    out2 = jax.block_until_ready(out2)
    ref2 = _reference(x2, weight, gamma, beta)
    assert out2.shape == (N2, out_feature, H2, W2)
    assert jnp.max(jnp.abs(out2 - ref2)) < 1e-4

    print("KERNEL_OK")
</pallas_src>

<mosaic_0001>
module attributes {stable_mosaic.version = 11 : i64} {
  func.func @stats_kernel(%arg0: i32, %arg1: i32, %arg2: i32, %arg3: memref<1x4x256xf32, #tpu.memory_space<vmem>>, %arg4: memref<1x1x4x1xf32, #tpu.memory_space<vmem>>, %arg5: memref<1x1x4x4xf32, #tpu.memory_space<vmem>>) attributes {dimension_semantics = [#tpu.dimension_semantics<parallel>, #tpu.dimension_semantics<parallel>, #tpu.dimension_semantics<arbitrary>], iteration_bounds = array<i64: 2, 1, 1>, scalar_prefetch = 0 : i64, scratch_operands = 0 : i64, tpu.core_type = #tpu.core_type<tc>, window_params = [{transform_indices = @transform_0, window_bounds = array<i64: 1, 4, 256>}, {transform_indices = @transform_1, window_bounds = array<i64: 1, 1, 4, 1>}, {transform_indices = @transform_2, window_bounds = array<i64: 1, 1, 4, 4>}]} {
    %c0_i32 = arith.constant 0 : i32
    %0 = arith.cmpi eq, %arg2, %c0_i32 : i32
    %1 = arith.extui %0 : i1 to i32
    %c0_i32_0 = arith.constant 0 : i32
    %2 = arith.cmpi ne, %1, %c0_i32_0 : i32
    scf.if %2 {
      %cst_20 = arith.constant 0.000000e+00 : f32
      %20 = vector.broadcast %cst_20 : f32 to vector<4x1xf32>
      %c0_21 = arith.constant 0 : index
      %c0_22 = arith.constant 0 : index
      %c0_23 = arith.constant 0 : index
      %c0_24 = arith.constant 0 : index
      %21 = vector.load %arg4[%c0_21, %c0_22, %c0_23, %c0_24] : memref<1x1x4x1xf32, #tpu.memory_space<vmem>>, vector<1x1x4x1xf32>
      %22 = vector.shape_cast %21 : vector<1x1x4x1xf32> to vector<4x1xf32>
      %23 = vector.shape_cast %20 : vector<4x1xf32> to vector<1x1x4x1xf32>
      tpu.vector_store %arg4[%c0_21, %c0_22, %c0_23, %c0_24], %23 {strides = array<i32>} : memref<1x1x4x1xf32, #tpu.memory_space<vmem>>, vector<1x1x4x1xf32>,
      %cst_25 = arith.constant 0.000000e+00 : f32
      %24 = vector.broadcast %cst_25 : f32 to vector<4x4xf32>
      %c0_26 = arith.constant 0 : index
      %c0_27 = arith.constant 0 : index
      %c0_28 = arith.constant 0 : index
      %c0_29 = arith.constant 0 : index
      %25 = vector.load %arg5[%c0_26, %c0_27, %c0_28, %c0_29] : memref<1x1x4x4xf32, #tpu.memory_space<vmem>>, vector<1x1x4x4xf32>
      %26 = vector.shape_cast %25 : vector<1x1x4x4xf32> to vector<4x4xf32>
      %27 = vector.shape_cast %24 : vector<4x4xf32> to vector<1x1x4x4xf32>
      tpu.vector_store %arg5[%c0_26, %c0_27, %c0_28, %c0_29], %27 {strides = array<i32>} : memref<1x1x4x4xf32, #tpu.memory_space<vmem>>, vector<1x1x4x4xf32>,
    } else {
    }
    %c0 = arith.constant 0 : index
    %c0_1 = arith.constant 0 : index
    %c0_2 = arith.constant 0 : index
    %3 = vector.load %arg3[%c0, %c0_1, %c0_2] : memref<1x4x256xf32, #tpu.memory_space<vmem>>, vector<1x4x256xf32>
    %4 = vector.shape_cast %3 : vector<1x4x256xf32> to vector<4x256xf32>
    %c0_3 = arith.constant 0 : index
    %c0_4 = arith.constant 0 : index
    %c0_5 = arith.constant 0 : index
    %c0_6 = arith.constant 0 : index
    %5 = vector.load %arg4[%c0_3, %c0_4, %c0_5, %c0_6] : memref<1x1x4x1xf32, #tpu.memory_space<vmem>>, vector<1x1x4x1xf32>
    %6 = vector.shape_cast %5 : vector<1x1x4x1xf32> to vector<4x1xf32>
    %cst = arith.constant dense<0.000000e+00> : vector<4xf32>
    %7 = vector.multi_reduction <add>, %4, %cst [1] : vector<4x256xf32> to vector<4xf32>
    %8 = vector.shape_cast %7 : vector<4xf32> to vector<4x1xf32>
    %9 = arith.addf %6, %8 : vector<4x1xf32>
    %c0_7 = arith.constant 0 : index
    %c0_8 = arith.constant 0 : index
    %c0_9 = arith.constant 0 : index
    %c0_10 = arith.constant 0 : index
    %10 = vector.load %arg4[%c0_7, %c0_8, %c0_9, %c0_10] : memref<1x1x4x1xf32, #tpu.memory_space<vmem>>, vector<1x1x4x1xf32>
    %11 = vector.shape_cast %10 : vector<1x1x4x1xf32> to vector<4x1xf32>
    %12 = vector.shape_cast %9 : vector<4x1xf32> to vector<1x1x4x1xf32>
    tpu.vector_store %arg4[%c0_7, %c0_8, %c0_9, %c0_10], %12 {strides = array<i32>} : memref<1x1x4x1xf32, #tpu.memory_space<vmem>>, vector<1x1x4x1xf32>,
    %c0_11 = arith.constant 0 : index
    %c0_12 = arith.constant 0 : index
    %c0_13 = arith.constant 0 : index
    %c0_14 = arith.constant 0 : index
    %13 = vector.load %arg5[%c0_11, %c0_12, %c0_13, %c0_14] : memref<1x1x4x4xf32, #tpu.memory_space<vmem>>, vector<1x1x4x4xf32>
    %14 = vector.shape_cast %13 : vector<1x1x4x4xf32> to vector<4x4xf32>
    %cst_15 = arith.constant dense<0.000000e+00> : vector<4x4xf32>
    %15 = tpu.matmul %4, %4, %cst_15 {dimension_numbers = #tpu.dot_dimension_numbers<[1], [1], [0], [0], [0, 0, 1, 0], [], []>} : vector<4x256xf32>, vector<4x256xf32>, vector<4x4xf32> -> vector<4x4xf32>
    %16 = arith.addf %14, %15 : vector<4x4xf32>
    %c0_16 = arith.constant 0 : index
    %c0_17 = arith.constant 0 : index
    %c0_18 = arith.constant 0 : index
    %c0_19 = arith.constant 0 : index
    %17 = vector.load %arg5[%c0_16, %c0_17, %c0_18, %c0_19] : memref<1x1x4x4xf32, #tpu.memory_space<vmem>>, vector<1x1x4x4xf32>
    %18 = vector.shape_cast %17 : vector<1x1x4x4xf32> to vector<4x4xf32>
    %19 = vector.shape_cast %16 : vector<4x4xf32> to vector<1x1x4x4xf32>
    tpu.vector_store %arg5[%c0_16, %c0_17, %c0_18, %c0_19], %19 {strides = array<i32>} : memref<1x1x4x4xf32, #tpu.memory_space<vmem>>, vector<1x1x4x4xf32>,
    return
  }
  func.func @transform_0(%arg0: i32, %arg1: i32, %arg2: i32) -> (i32, i32, i32) {
    %c1_i32 = arith.constant 1 : i32
    %0 = arith.muli %arg1, %c1_i32 : i32
    %1 = arith.addi %0, %arg2 : i32
    %c0_i32 = arith.constant 0 : i32
    %2 = arith.minsi %1, %c0_i32 : i32
    %c0_i32_0 = arith.constant 0 : i32
    %c0_i32_1 = arith.constant 0 : i32
    return %arg0, %c0_i32_0, %2 : i32, i32, i32
  }
  func.func @transform_1(%arg0: i32, %arg1: i32, %arg2: i32) -> (i32, i32, i32, i32) {
    %c0_i32 = arith.constant 0 : i32
    %c0_i32_0 = arith.constant 0 : i32
    %c0_i32_1 = arith.constant 0 : i32
    return %arg0, %arg1, %c0_i32, %c0_i32_0 : i32, i32, i32, i32
  }
  func.func @transform_2(%arg0: i32, %arg1: i32, %arg2: i32) -> (i32, i32, i32, i32) {
    %c0_i32 = arith.constant 0 : i32
    %c0_i32_0 = arith.constant 0 : i32
    %c0_i32_1 = arith.constant 0 : i32
    return %arg0, %arg1, %c0_i32, %c0_i32_0 : i32, i32, i32, i32
  }
}

module attributes {stable_mosaic.version = 11 : i64} {
  func.func @conv_bn_relu_kernel(%arg0: i32, %arg1: i32, %arg2: memref<1x4x256xf32, #tpu.memory_space<vmem>>, %arg3: memref<8x4xf32, #tpu.memory_space<vmem>>, %arg4: memref<8x1xf32, #tpu.memory_space<vmem>>, %arg5: memref<1x8x256xf32, #tpu.memory_space<vmem>>) attributes {dimension_semantics = [#tpu.dimension_semantics<parallel>, #tpu.dimension_semantics<parallel>], iteration_bounds = array<i64: 2, 1>, scalar_prefetch = 0 : i64, scratch_operands = 0 : i64, tpu.core_type = #tpu.core_type<tc>, window_params = [{transform_indices = @transform_0, window_bounds = array<i64: 1, 4, 256>}, {pipeline_mode = #tpu.pipeline_mode<synchronous>, transform_indices = @transform_1, window_bounds = array<i64: 8, 4>}, {pipeline_mode = #tpu.pipeline_mode<synchronous>, transform_indices = @transform_2, window_bounds = array<i64: 8, 1>}, {transform_indices = @transform_3, window_bounds = array<i64: 1, 8, 256>}]} {
    %c0 = arith.constant 0 : index
    %c0_0 = arith.constant 0 : index
    %c0_1 = arith.constant 0 : index
    %0 = vector.load %arg2[%c0, %c0_0, %c0_1] : memref<1x4x256xf32, #tpu.memory_space<vmem>>, vector<1x4x256xf32>
    %1 = vector.shape_cast %0 : vector<1x4x256xf32> to vector<4x256xf32>
    %c0_2 = arith.constant 0 : index
    %c0_3 = arith.constant 0 : index
    %2 = vector.load %arg3[%c0_2, %c0_3] : memref<8x4xf32, #tpu.memory_space<vmem>>, vector<8x4xf32>
    %cst = arith.constant dense<0.000000e+00> : vector<8x256xf32>
    %3 = tpu.matmul %2, %1, %cst {dimension_numbers = #tpu.dot_dimension_numbers<[1], [0], [0], [1], [0, 0, 1, 1], [], []>} : vector<8x4xf32>, vector<4x256xf32>, vector<8x256xf32> -> vector<8x256xf32>
    %c0_4 = arith.constant 0 : index
    %c0_5 = arith.constant 0 : index
    %4 = vector.load %arg4[%c0_4, %c0_5] : memref<8x1xf32, #tpu.memory_space<vmem>>, vector<8x1xf32>
    %5 = vector.broadcast %4 : vector<8x1xf32> to vector<8x256xf32>
    %6 = arith.addf %3, %5 : vector<8x256xf32>
    %cst_6 = arith.constant 0.000000e+00 : f32
    %7 = vector.broadcast %cst_6 : f32 to vector<8x256xf32>
    %8 = arith.maximumf %6, %7 : vector<8x256xf32>
    %c0_7 = arith.constant 0 : index
    %c0_8 = arith.constant 0 : index
    %c0_9 = arith.constant 0 : index
    %9 = vector.load %arg5[%c0_7, %c0_8, %c0_9] : memref<1x8x256xf32, #tpu.memory_space<vmem>>, vector<1x8x256xf32>
    %10 = vector.shape_cast %9 : vector<1x8x256xf32> to vector<8x256xf32>
    %11 = vector.shape_cast %8 : vector<8x256xf32> to vector<1x8x256xf32>
    tpu.vector_store %arg5[%c0_7, %c0_8, %c0_9], %11 {strides = array<i32>} : memref<1x8x256xf32, #tpu.memory_space<vmem>>, vector<1x8x256xf32>,
    return
  }
  func.func @transform_0(%arg0: i32, %arg1: i32) -> (i32, i32, i32) {
    %c0_i32 = arith.constant 0 : i32
    %c0_i32_0 = arith.constant 0 : i32
    return %arg0, %c0_i32, %arg1 : i32, i32, i32
  }
  func.func @transform_1(%arg0: i32, %arg1: i32) -> (i32, i32) {
    %c0_i32 = arith.constant 0 : i32
    %c0_i32_0 = arith.constant 0 : i32
    %c0_i32_1 = arith.constant 0 : i32
    return %c0_i32, %c0_i32_0 : i32, i32
  }
  func.func @transform_2(%arg0: i32, %arg1: i32) -> (i32, i32) {
    %c0_i32 = arith.constant 0 : i32
    %c0_i32_0 = arith.constant 0 : i32
    %c0_i32_1 = arith.constant 0 : i32
    return %c0_i32, %c0_i32_0 : i32, i32
  }
  func.func @transform_3(%arg0: i32, %arg1: i32) -> (i32, i32, i32) {
    %c0_i32 = arith.constant 0 : i32
    %c0_i32_0 = arith.constant 0 : i32
    return %arg0, %c0_i32, %arg1 : i32, i32, i32
  }
}

</mosaic_0001>

<llo_original>
// kernel: transfer_conv_forward.2
$region0: #{transfer_conv_forward.2}
  #allocation0 [shape = 'u32[]', space=smem, size = 0x4, offset = 0x4, fixed_abs, tag = 'smem constant byte address 0x4 - core index']
  #allocation1 [shape = 'u32[144,128]{1,0:T(1,128)}', space=vmem, size = 0x12000, scoped, tag = 'internal scratch']
  %s0 = inlined_call_operand.vmem [shape: f32[2,4,256], index: 0, kind: input, shape index: {}]
  %s1 = inlined_call_operand.vmem [shape: f32[2,1,4,1], index: 1, kind: output, shape index: {0}]
  %s2 = inlined_call_operand.vmem [shape: f32[2,1,4,4], index: 2, kind: output, shape index: {1}]
  %3 = xla_tuple %s1, %s2
  %s4 = sld [smem:[#allocation0]]
  $region49: #{transfer_conv_forward.2} parent=0
    _
  %s6 = ssub.s32 1, %s4
  %s7 = scalar_select 0, %s6, %s4
  loop: start=0, step=1, limit=4
  $region2: #{transfer_conv_forward.2} parent=0 // loop_pre_header
    _
  $region3: #{transfer_conv_forward.2} parent=0 // loop_header
    %s9 = sphi 0, %s13
    %p10 = scmp.ge.s32.totalorder %s9, 4
    %s16 = sphi 0, %s35
    %s17 = sphi 0, %s31
    %s18 = sphi 0, %s27
    %s19 = sphi 0, %s16
    %s20 = sphi 0, %s17
    %s21 = sphi 0, %s18
    %s22 = sphi 0, %s19
    %s23 = sphi 0, %s20
    %s24 = sphi 0, %s21
    %s46 = sphi 0, %s48
    %s49 = sphi 0, %s46
    %s50 = sphi 0, %s49
    %s66 = sphi 0, %s50
    %s74 = sphi 0, %s76
    %s77 = sphi 0, %s74
    %s78 = sphi 0, %s77
    %s94 = sphi 0, %s78
    %s102 = sphi 0, %s104
    %s105 = sphi 0, %s102
    %s106 = sphi 0, %s105
    %s122 = sphi 0, %s106
  $region4: #{transfer_conv_forward.2} parent=0 // loop_header_branch
    %12 = sbr.rel (%p10) target = $region8
  $region5: #{transfer_conv_forward.2} parent=0 // loop_body
    %s14 = ssub.s32 %s9, 1
    %s15 = ssub.s32 %s9, 2
    %s25 = sadd.s32 1, %s18
    %p26 = scmp.ge.s32.totalorder %s25, 1
    %s27 = scalar_select %p26, 0, %s25
    %s28 = sadd.s32 1, %s17
    %s29 = scalar_select %p26, %s28, %s17
    %p30 = scmp.ge.s32.totalorder %s29, 1
    %s31 = scalar_select %p30, 0, %s29
    %s32 = sadd.s32 1, %s16
    %s33 = scalar_select %p30, %s32, %s16
    %p34 = scmp.ge.s32.totalorder %s33, 2
    %s35 = scalar_select %p34, 0, %s33
    %s36 = sadd.s32 %s17, %s18
    %p37 = scmp.lt.s32.totalorder %s36, 0
    %s38 = scalar_select %p37, %s36, 0
    %s39 = sadd.s32 %s31, %s27
    %p40 = scmp.lt.s32.totalorder %s39, 0
    %s41 = scalar_select %p40, %s39, 0
    %s42 = ssub.s32 %s16, %s35
    %s43 = ssub.s32 %s38, %s41
    %s44 = sor.u32 %s42, %s43
    %p45 = scmp.eq.s32.totalorder %s44, 0
    %s47 = sadd.s32 %s46, 1
    %s48 = scalar_select %p45, %s46, %s47
    %p51 = pneg %p45
    %p52 = scmp.eq.s32.totalorder %s9, 1
    %p53 = por %p51, %p52
    %p54 = scmp.ne.s32.totalorder %s46, %s49
    %p55 = scmp.eq.s32.totalorder %s9, 0
    %p56 = por %p54, %p55
    %p57 = scmp.ne.s32.totalorder %s46, %s49
    %p58 = scmp.eq.s32.totalorder %s14, 1
    %p59 = por %p57, %p58
    %p60 = scmp.ne.s32.totalorder %s49, %s50
    %p61 = scmp.eq.s32.totalorder %s14, 0
    %p62 = por %p60, %p61
    %p63 = scmp.ne.s32.totalorder %s49, %s50
    %p64 = scmp.eq.s32.totalorder %s15, 1
    %p65 = por %p63, %p64
    %p67 = scmp.ne.s32.totalorder %s50, %s66
    %p68 = scmp.eq.s32.totalorder %s15, 0
    %p69 = por %p67, %p68
    %s70 = ssub.s32 %s16, %s35
    %s71 = ssub.s32 %s17, %s31
    %s72 = sor.u32 %s70, %s71
    %p73 = scmp.eq.s32.totalorder %s72, 0
    %s75 = sadd.s32 %s74, 1
    %s76 = scalar_select %p73, %s74, %s75
    %p79 = pneg %p73
    %p80 = scmp.eq.s32.totalorder %s9, 1
    %p81 = por %p79, %p80
    %p82 = scmp.ne.s32.totalorder %s74, %s77
    %p83 = scmp.eq.s32.totalorder %s9, 0
    %p84 = por %p82, %p83
    %p85 = scmp.ne.s32.totalorder %s74, %s77
    %p86 = scmp.eq.s32.totalorder %s14, 1
    %p87 = por %p85, %p86
    %p88 = scmp.ne.s32.totalorder %s77, %s78
    %p89 = scmp.eq.s32.totalorder %s14, 0
    %p90 = por %p88, %p89
    %p91 = scmp.ne.s32.totalorder %s77, %s78
    %p92 = scmp.eq.s32.totalorder %s15, 1
    %p93 = por %p91, %p92
    %p95 = scmp.ne.s32.totalorder %s78, %s94
    %p96 = scmp.eq.s32.totalorder %s15, 0
    %p97 = por %p95, %p96
    %s98 = ssub.s32 %s16, %s35
    %s99 = ssub.s32 %s17, %s31
    %s100 = sor.u32 %s98, %s99
    %p101 = scmp.eq.s32.totalorder %s100, 0
    %s103 = sadd.s32 %s102, 1
    %s104 = scalar_select %p101, %s102, %s103
    %p107 = pneg %p101
    %p108 = scmp.eq.s32.totalorder %s9, 1
    %p109 = por %p107, %p108
    %p110 = scmp.ne.s32.totalorder %s102, %s105
    %p111 = scmp.eq.s32.totalorder %s9, 0
    %p112 = por %p110, %p111
    %p113 = scmp.ne.s32.totalorder %s102, %s105
    %p114 = scmp.eq.s32.totalorder %s14, 1
    %p115 = por %p113, %p114
    %p116 = scmp.ne.s32.totalorder %s105, %s106
    %p117 = scmp.eq.s32.totalorder %s14, 0
    %p118 = por %p116, %p117
    %p119 = scmp.ne.s32.totalorder %s105, %s106
    %p120 = scmp.eq.s32.totalorder %s15, 1
    %p121 = por %p119, %p120
    %p123 = scmp.ne.s32.totalorder %s106, %s122
    %p124 = scmp.eq.s32.totalorder %s15, 0
    %p125 = por %p123, %p124
    %p126 = scmp.le.s32.totalorder 1, %s9
    %p127 = scmp.lt.s32.totalorder %s9, 3
    %p128 = pnand %p126, %p127
    %p129 = pneg %p128
    // Predicated region
    $region9: #{transfer_conv_forward.2} parent=5 // pred_check
      _
    $region10: #{transfer_conv_forward.2} parent=5 // pred_check_branch
      %131 = sbr.rel (%p128) target = $region12
    $region11: #{transfer_conv_forward.2} parent=5 // pred_region
      %s132 = ssub.s32 %s9, 1
    $region12: #{transfer_conv_forward.2} parent=5 // pred_fallthru
      _
    %p133 = scmp.lt.s32.totalorder %s9, 2
    // Predicated region
    $region13: #{transfer_conv_forward.2} parent=5 // pred_check
      %p134 = pneg %p133
    $region14: #{transfer_conv_forward.2} parent=5 // pred_check_branch
      %136 = sbr.rel (%p134) target = $region16
    $region15: #{transfer_conv_forward.2} parent=5 // pred_region
      // Predicated region
      $region17: #{transfer_conv_forward.2} parent=15 // pred_check
        %p137 = pneg %p56
      $region18: #{transfer_conv_forward.2} parent=15 // pred_check_branch
        %139 = sbr.rel (%p137) target = $region20
      $region19: #{transfer_conv_forward.2} parent=15 // pred_region
        %s140 = sadd.s32 %s17, %s18
        %p141 = scmp.lt.s32.totalorder %s140, 0
        %s142 = scalar_select %p141, %s140, 0
        %s143 = smul.u32 2, %s142
        %p144 = scmp.lt.s32.totalorder %s16, 1
        %s145 = scalar_select %p144, %s16, 1
        %p146 = scmp.lt.s32.totalorder %s143, 1
        %s147 = scalar_select %p146, %s143, 1
        %s148 = smul.addr %s145, 2
        %s149 = sadd.s32 %s147, %s148
        %s150 = smul.addr %s149, 4
        %s151 = scalar_lea.vmem %s0, %s150
        %s152 = sadd.s32 %s17, %s18
        %p153 = scmp.lt.s32.totalorder %s152, 0
        %s154 = scalar_select %p153, %s152, 0
        %s155 = smul.u32 2, %s154
      $region20: #{transfer_conv_forward.2} parent=15 // pred_fallthru
        _
    $region16: #{transfer_conv_forward.2} parent=5 // pred_fallthru
      _
    %p156 = scmp.le.s32.totalorder 1, %s9
    %p157 = scmp.lt.s32.totalorder %s9, 3
    %p158 = pnand %p156, %p157
    %p159 = pneg %p158
    // Predicated region
    $region21: #{transfer_conv_forward.2} parent=5 // pred_check
      _
    $region22: #{transfer_conv_forward.2} parent=5 // pred_check_branch
      %161 = sbr.rel (%p158) target = $region24
    $region23: #{transfer_conv_forward.2} parent=5 // pred_region
      %s162 = ssub.s32 %s9, 1
      %s163 = sadd.s32 %s20, %s21
      %p164 = scmp.lt.s32.totalorder %s163, 0
      %s165 = scalar_select %p164, %s163, 0
      %s166 = smul.u32 2, %s165
      %p167 = scmp.lt.s32.totalorder %s19, 1
      %s168 = scalar_select %p167, %s19, 1
      %p169 = scmp.lt.s32.totalorder %s166, 1
      %s170 = scalar_select %p169, %s166, 1
      %s171 = smul.addr %s168, 2
      %s172 = sadd.s32 %s170, %s171
      %s173 = smul.addr %s172, 4
      %s174 = scalar_lea.vmem %s0, %s173
      %p175 = pneg %p62
      %p176 = pneg %p59
      %p177 = pneg %p90
      %p178 = pneg %p87
      %p179 = scmp.lt.s32.totalorder %s19, 1
      %s180 = scalar_select %p179, %s19, 1
      %p181 = scmp.lt.s32.totalorder %s20, 0
      %s182 = scalar_select %p181, %s20, 0
      %s183 = sadd.s32 %s182, %s180
      %s184 = smul.addr %s183, 4
      %s185 = scalar_lea.vmem %s1, %s184
      %p186 = pneg %p118
      %p187 = pneg %p115
      %p188 = scmp.lt.s32.totalorder %s19, 1
      %s189 = scalar_select %p188, %s19, 1
      %p190 = scmp.lt.s32.totalorder %s20, 0
      %s191 = scalar_select %p190, %s20, 0
      %s192 = sadd.s32 %s191, %s189
      %s193 = smul.addr %s192, 4
      %s194 = scalar_lea.vmem %s2, %s193
      %s195 = sadd.s32 %s20, %s21
      %p196 = scmp.lt.s32.totalorder %s195, 0
      %s197 = scalar_select %p196, %s195, 0
      %s198 = smul.u32 2, %s197
      %p199 = scmp.lt.s32.totalorder %s19, 1
      %s200 = scalar_select %p199, %s19, 1
      %p201 = scmp.lt.s32.totalorder %s198, 1
      %s202 = scalar_select %p201, %s198, 1
      %s203 = smul.addr %s200, 2
      %s204 = sadd.s32 %s202, %s203
      %s205 = smul.addr %s204, 4
      %s206 = scalar_lea.vmem %s0, %s205
      %s207 = sadd.s32 %s20, %s21
      %p208 = scmp.lt.s32.totalorder %s207, 0
      %s209 = scalar_select %p208, %s207, 0
      %s210 = smul.u32 2, %s209
      %p211 = scmp.lt.s32.totalorder %s19, 1
      %s212 = scalar_select %p211, %s19, 1
      %p213 = scmp.lt.s32.totalorder %s20, 0
      %s214 = scalar_select %p213, %s20, 0
      %s215 = sadd.s32 %s214, %s212
      %s216 = smul.addr %s215, 4
      %s217 = scalar_lea.vmem %s1, %s216
      %p218 = scmp.lt.s32.totalorder %s19, 1
      %s219 = scalar_select %p218, %s19, 1
      %p220 = scmp.lt.s32.totalorder %s20, 0
      %s221 = scalar_select %p220, %s20, 0
      %s222 = sadd.s32 %s221, %s219
      %s223 = smul.addr %s222, 4
      %s224 = scalar_lea.vmem %s2, %s223
      %p225 = scmp.eq.s32.totalorder %s21, 0
      // Predicated region
      $region25: #{transfer_conv_forward.2} parent=23 // pred_check
        %p226 = pneg %p225
      $region26: #{transfer_conv_forward.2} parent=23 // pred_check_branch
        %228 = sbr.rel (%p226) target = $region28
      $region27: #{transfer_conv_forward.2} parent=23 // pred_region
        %vm229 = vcmask 3072
        %230 = vst.msk [vmem:[%s217] sm:$0xf] %vm229, 0.0
        %vm231 = vcmask 27648
        %232 = vst.msk [vmem:[%s224] sm:$0xf] %vm231, 0.0
      $region28: #{transfer_conv_forward.2} parent=23 // pred_fallthru
        _
      %v233 = vld [vmem:[%s206] sm:$0xff]
      %v234 = vld [vmem:[%s217] sm:$0xf]
      %v236 = vcombine.high %v233, %v233
      %vm238 = vcmask 1043456
      %v239 = vsel %vm238, %v233, 0.0
      %v240 = vsel %vm238, %v236, 0.0
      %v241 = vadd.f32 %v239, %v240
      %242 = vadd.xlane.f32.xlu0 %v241
      %v243 = vpop.xlane.xlu0 %242
      %v244 = vadd.f32 %v234, %v243
      %vm245 = vcmask 3072
      %246 = vst.msk [vmem:[%s217] sm:$0xf] %vm245, %v244
      %v247 = vld [vmem:[%s224] sm:$0xf]
      %248 = vmatprep.subr.mxu0 0.0
      %249 = vmatpush1.xpose.msra.mxu0 0.0
      %250 = vmatprep.subr.mxu0 0.0
      %251 = vmatpush1.xpose.msra.mxu0 0.0
      %252 = vmatprep.subr.mxu0 0.0
      %253 = vmatpush1.xpose.msra.mxu0 0.0
      %254 = vmatprep.subr.mxu0 0.0
      %255 = vmatpush1.xpose.msra.mxu0 0.0
      %256 = vmatprep.subr.mxu0 0.0
      %257 = vmatpush1.xpose.msra.mxu0 0.0
      %258 = vmatprep.subr.mxu0 0.0
      %259 = vmatpush1.xpose.msra.mxu0 0.0
      %260 = vmatprep.subr.mxu0 0.0
      %261 = vmatpush1.xpose.msra.mxu0 0.0
      %262 = vmatprep.subr.mxu0 0.0
      %263 = vmatpush1.xpose.msra.mxu0 0.0
      %264 = vmatprep.subr.mxu0 0.0
      %265 = vmatpush1.xpose.msra.mxu0 0.0
      %266 = vmatprep.subr.mxu0 0.0
      %267 = vmatpush1.xpose.msra.mxu0 0.0
      %268 = vmatprep.subr.mxu0 0.0
      %269 = vmatpush1.xpose.msra.mxu0 0.0
      %270 = vmatprep.subr.mxu0 0.0
      %271 = vmatpush1.xpose.msra.mxu0 0.0
      %272 = vmatprep.subr.mxu0 0.0
      %273 = vmatpush1.xpose.msra.mxu0 0.0
      %274 = vmatprep.subr.mxu0 0.0
      %275 = vmatpush1.xpose.msra.mxu0 0.0
      %276 = vmatprep.subr.mxu0 0.0
      %277 = vmatpush1.xpose.msra.mxu0 0.0
      %278 = vmatprep.subr.mxu0 %v236
      %279 = vmatpush1.xpose.msra.mxu0 %v233
      %280 = vmatprep.subr.mxu0 0.0
      %281 = vmatpush2.xpose.msra.mxu0 0.0
      %282 = vmatprep.subr.mxu0 0.0
      %283 = vmatpush2.xpose.msra.mxu0 0.0
      %284 = vmatprep.subr.mxu0 0.0
      %285 = vmatpush2.xpose.msra.mxu0 0.0
      %286 = vmatprep.subr.mxu0 0.0
      %287 = vmatpush2.xpose.msra.mxu0 0.0
      %288 = vmatprep.subr.mxu0 0.0
      %289 = vmatpush2.xpose.msra.mxu0 0.0
      %290 = vmatprep.subr.mxu0 0.0
      %291 = vmatpush2.xpose.msra.mxu0 0.0
      %292 = vmatprep.subr.mxu0 0.0
      %293 = vmatpush2.xpose.msra.mxu0 0.0
      %294 = vmatprep.subr.mxu0 0.0
      %295 = vmatpush2.xpose.msra.mxu0 0.0
      %296 = vmatprep.subr.mxu0 0.0
      %297 = vmatpush2.xpose.msra.mxu0 0.0
      %298 = vmatprep.subr.mxu0 0.0
      %299 = vmatpush2.xpose.msra.mxu0 0.0
      %300 = vmatprep.subr.mxu0 0.0
      %301 = vmatpush2.xpose.msra.mxu0 0.0
      %302 = vmatprep.subr.mxu0 0.0
      %303 = vmatpush2.xpose.msra.mxu0 0.0
      %304 = vmatprep.subr.mxu0 0.0
      %305 = vmatpush2.xpose.msra.mxu0 0.0
      %306 = vmatprep.subr.mxu0 0.0
      %307 = vmatpush2.xpose.msra.mxu0 0.0
      %308 = vmatprep.subr.mxu0 0.0
      %309 = vmatpush2.xpose.msra.mxu0 0.0
      %310 = vmatprep.subr.mxu0 0.0
      %311 = vmatpush2.xpose.msra.mxu0 0.0
      %312 = vmatprep.mubr.f32.mxu0 %v236
      %313 = vmatmul.mubr.f32.gmra.mxu0 %v233
      %v314 = vpop.f32.mrf.mxu0
      %v315 = vadd.f32 0.0, %v314
      %v316 = vpop.f32.mrf.mxu0
      %317 = vdwg.mxu0
      %v318 = vadd.f32 %v247, %v315
      %vm319 = vcmask 27648
      %320 = vst.msk [vmem:[%s224] sm:$0xf] %vm319, %v318
      %p321 = scmp.lt.s32.totalorder %s19, 1
      %s322 = scalar_select %p321, %s19, 1
      %p323 = scmp.lt.s32.totalorder %s20, 0
      %s324 = scalar_select %p323, %s20, 0
      %s325 = sadd.s32 %s324, %s322
      %s326 = smul.addr %s325, 4
      %s327 = scalar_lea.vmem %s1, %s326
      %p328 = scmp.lt.s32.totalorder %s19, 1
      %s329 = scalar_select %p328, %s19, 1
      %p330 = scmp.lt.s32.totalorder %s20, 0
      %s331 = scalar_select %p330, %s20, 0
      %s332 = sadd.s32 %s331, %s329
      %s333 = smul.addr %s332, 4
      %s334 = scalar_lea.vmem %s2, %s333
      // Predicated region
      $region29: #{transfer_conv_forward.2} parent=23 // pred_check
        %p335 = pneg %p87
      $region30: #{transfer_conv_forward.2} parent=23 // pred_check_branch
        %337 = sbr.rel (%p335) target = $region32
      $region31: #{transfer_conv_forward.2} parent=23 // pred_region
        _
      $region32: #{transfer_conv_forward.2} parent=23 // pred_fallthru
        _
      // Predicated region
      $region33: #{transfer_conv_forward.2} parent=23 // pred_check
        %p338 = pneg %p115
      $region34: #{transfer_conv_forward.2} parent=23 // pred_check_branch
        %340 = sbr.rel (%p338) target = $region36
      $region35: #{transfer_conv_forward.2} parent=23 // pred_region
        _
      $region36: #{transfer_conv_forward.2} parent=23 // pred_fallthru
        _
    $region24: #{transfer_conv_forward.2} parent=5 // pred_fallthru
      _
    %p341 = scmp.le.s32.totalorder 2, %s9
    // Predicated region
    $region37: #{transfer_conv_forward.2} parent=5 // pred_check
      %p342 = pneg %p341
    $region38: #{transfer_conv_forward.2} parent=5 // pred_check_branch
      %344 = sbr.rel (%p342) target = $region40
    $region39: #{transfer_conv_forward.2} parent=5 // pred_region
      %s345 = ssub.s32 %s9, 2
      // Predicated region
      $region41: #{transfer_conv_forward.2} parent=39 // pred_check
        %p346 = pneg %p93
      $region42: #{transfer_conv_forward.2} parent=39 // pred_check_branch
        %348 = sbr.rel (%p346) target = $region44
      $region43: #{transfer_conv_forward.2} parent=39 // pred_region
        %p349 = scmp.lt.s32.totalorder %s22, 1
        %s350 = scalar_select %p349, %s22, 1
        %p351 = scmp.lt.s32.totalorder %s23, 0
        %s352 = scalar_select %p351, %s23, 0
        %s353 = sadd.s32 %s352, %s350
        %s354 = smul.addr %s353, 4
        %s355 = scalar_lea.vmem %s1, %s354
      $region44: #{transfer_conv_forward.2} parent=39 // pred_fallthru
        _
      // Predicated region
      $region45: #{transfer_conv_forward.2} parent=39 // pred_check
        %p356 = pneg %p121
      $region46: #{transfer_conv_forward.2} parent=39 // pred_check_branch
        %358 = sbr.rel (%p356) target = $region48
      $region47: #{transfer_conv_forward.2} parent=39 // pred_region
        %p359 = scmp.lt.s32.totalorder %s22, 1
        %s360 = scalar_select %p359, %s22, 1
        %p361 = scmp.lt.s32.totalorder %s23, 0
        %s362 = scalar_select %p361, %s23, 0
        %s363 = sadd.s32 %s362, %s360
        %s364 = smul.addr %s363, 4
        %s365 = scalar_lea.vmem %s2, %s364
      $region48: #{transfer_conv_forward.2} parent=39 // pred_fallthru
        _
    $region40: #{transfer_conv_forward.2} parent=5 // pred_fallthru
      _
  $region6: #{transfer_conv_forward.2} parent=0 // loop_footer
    %s13 = sadd.s32 1, %s9
  $region7: #{transfer_conv_forward.2} parent=0 // loop_footer_branch
    %8 = sbr.rel target = $region3
  $region8: #{transfer_conv_forward.2} parent=0 // loop_exit
    _

// kernel: transfer_conv_forward.3
$region0: #{transfer_conv_forward.3}
  #allocation0 [shape = 'u32[]', space=smem, size = 0x4, offset = 0x4, fixed_abs, tag = 'smem constant byte address 0x4 - core index']
  #allocation1 [shape = 'u32[144,128]{1,0:T(1,128)}', space=vmem, size = 0x12000, scoped, tag = 'internal scratch']
  %s0 = inlined_call_operand.vmem [shape: f32[2,4,256], index: 0, kind: input, shape index: {}]
  %s1 = inlined_call_operand.vmem [shape: f32[8,4], index: 1, kind: input, shape index: {}]
  %s2 = inlined_call_operand.vmem [shape: f32[8,1], index: 2, kind: input, shape index: {}]
  %s3 = inlined_call_operand.vmem [shape: f32[2,8,256], index: 3, kind: output, shape index: {}]
  %s4 = sld [smem:[#allocation0]]
  $region45: #{transfer_conv_forward.3} parent=0
    _
  %s6 = ssub.s32 1, %s4
  %s7 = scalar_select 0, %s6, %s4
  loop: start=0, step=1, limit=4
  $region2: #{transfer_conv_forward.3} parent=0 // loop_pre_header
    _
  $region3: #{transfer_conv_forward.3} parent=0 // loop_header
    %s9 = sphi 0, %s13
    %p10 = scmp.ge.s32.totalorder %s9, 4
    %s16 = sphi 0, %s28
    %s17 = sphi 0, %s24
    %s18 = sphi 0, %s16
    %s19 = sphi 0, %s17
    %s20 = sphi 0, %s18
    %s21 = sphi 0, %s19
    %s33 = sphi 0, %s35
    %s36 = sphi 0, %s33
    %s37 = sphi 0, %s36
    %s53 = sphi 0, %s37
    %s57 = sphi 0, %s57
    %s59 = sphi 0, %s57
    %s60 = sphi 0, %s59
    %s74 = sphi 0, %s60
    %s78 = sphi 0, %s78
    %s80 = sphi 0, %s78
    %s81 = sphi 0, %s80
    %s95 = sphi 0, %s81
    %s103 = sphi 0, %s105
    %s106 = sphi 0, %s103
    %s107 = sphi 0, %s106
    %s123 = sphi 0, %s107
  $region4: #{transfer_conv_forward.3} parent=0 // loop_header_branch
    %12 = sbr.rel (%p10) target = $region8
  $region5: #{transfer_conv_forward.3} parent=0 // loop_body
    %s14 = ssub.s32 %s9, 1
    %s15 = ssub.s32 %s9, 2
    %s22 = sadd.s32 1, %s17
    %p23 = scmp.ge.s32.totalorder %s22, 1
    %s24 = scalar_select %p23, 0, %s22
    %s25 = sadd.s32 1, %s16
    %s26 = scalar_select %p23, %s25, %s16
    %p27 = scmp.ge.s32.totalorder %s26, 2
    %s28 = scalar_select %p27, 0, %s26
    %s29 = ssub.s32 %s16, %s28
    %s30 = ssub.s32 %s17, %s24
    %s31 = sor.u32 %s29, %s30
    %p32 = scmp.eq.s32.totalorder %s31, 0
    %s34 = sadd.s32 %s33, 1
    %s35 = scalar_select %p32, %s33, %s34
    %p38 = pneg %p32
    %p39 = scmp.eq.s32.totalorder %s9, 1
    %p40 = por %p38, %p39
    %p41 = scmp.ne.s32.totalorder %s33, %s36
    %p42 = scmp.eq.s32.totalorder %s9, 0
    %p43 = por %p41, %p42
    %p44 = scmp.ne.s32.totalorder %s33, %s36
    %p45 = scmp.eq.s32.totalorder %s14, 1
    %p46 = por %p44, %p45
    %p47 = scmp.ne.s32.totalorder %s36, %s37
    %p48 = scmp.eq.s32.totalorder %s14, 0
    %p49 = por %p47, %p48
    %p50 = scmp.ne.s32.totalorder %s36, %s37
    %p51 = scmp.eq.s32.totalorder %s15, 1
    %p52 = por %p50, %p51
    %p54 = scmp.ne.s32.totalorder %s37, %s53
    %p55 = scmp.eq.s32.totalorder %s15, 0
    %p56 = por %p54, %p55
    %s58 = sadd.s32 %s57, 1
    %p61 = scmp.eq.s32.totalorder %s9, 1
    %p62 = scmp.ne.s32.totalorder %s57, %s59
    %p63 = scmp.eq.s32.totalorder %s9, 0
    %p64 = por %p62, %p63
    %p65 = scmp.ne.s32.totalorder %s57, %s59
    %p66 = scmp.eq.s32.totalorder %s14, 1
    %p67 = por %p65, %p66
    %p68 = scmp.ne.s32.totalorder %s59, %s60
    %p69 = scmp.eq.s32.totalorder %s14, 0
    %p70 = por %p68, %p69
    %p71 = scmp.ne.s32.totalorder %s59, %s60
    %p72 = scmp.eq.s32.totalorder %s15, 1
    %p73 = por %p71, %p72
    %p75 = scmp.ne.s32.totalorder %s60, %s74
    %p76 = scmp.eq.s32.totalorder %s15, 0
    %p77 = por %p75, %p76
    %s79 = sadd.s32 %s78, 1
    %p82 = scmp.eq.s32.totalorder %s9, 1
    %p83 = scmp.ne.s32.totalorder %s78, %s80
    %p84 = scmp.eq.s32.totalorder %s9, 0
    %p85 = por %p83, %p84
    %p86 = scmp.ne.s32.totalorder %s78, %s80
    %p87 = scmp.eq.s32.totalorder %s14, 1
    %p88 = por %p86, %p87
    %p89 = scmp.ne.s32.totalorder %s80, %s81
    %p90 = scmp.eq.s32.totalorder %s14, 0
    %p91 = por %p89, %p90
    %p92 = scmp.ne.s32.totalorder %s80, %s81
    %p93 = scmp.eq.s32.totalorder %s15, 1
    %p94 = por %p92, %p93
    %p96 = scmp.ne.s32.totalorder %s81, %s95
    %p97 = scmp.eq.s32.totalorder %s15, 0
    %p98 = por %p96, %p97
    %s99 = ssub.s32 %s16, %s28
    %s100 = ssub.s32 %s17, %s24
    %s101 = sor.u32 %s99, %s100
    %p102 = scmp.eq.s32.totalorder %s101, 0
    %s104 = sadd.s32 %s103, 1
    %s105 = scalar_select %p102, %s103, %s104
    %p108 = pneg %p102
    %p109 = scmp.eq.s32.totalorder %s9, 1
    %p110 = por %p108, %p109
    %p111 = scmp.ne.s32.totalorder %s103, %s106
    %p112 = scmp.eq.s32.totalorder %s9, 0
    %p113 = por %p111, %p112
    %p114 = scmp.ne.s32.totalorder %s103, %s106
    %p115 = scmp.eq.s32.totalorder %s14, 1
    %p116 = por %p114, %p115
    %p117 = scmp.ne.s32.totalorder %s106, %s107
    %p118 = scmp.eq.s32.totalorder %s14, 0
    %p119 = por %p117, %p118
    %p120 = scmp.ne.s32.totalorder %s106, %s107
    %p121 = scmp.eq.s32.totalorder %s15, 1
    %p122 = por %p120, %p121
    %p124 = scmp.ne.s32.totalorder %s107, %s123
    %p125 = scmp.eq.s32.totalorder %s15, 0
    %p126 = por %p124, %p125
    %p127 = scmp.le.s32.totalorder 1, %s9
    %p128 = scmp.lt.s32.totalorder %s9, 3
    %p129 = pnand %p127, %p128
    %p130 = pneg %p129
    // Predicated region
    $region9: #{transfer_conv_forward.3} parent=5 // pred_check
      _
    $region10: #{transfer_conv_forward.3} parent=5 // pred_check_branch
      %132 = sbr.rel (%p129) target = $region12
    $region11: #{transfer_conv_forward.3} parent=5 // pred_region
      %s133 = ssub.s32 %s9, 1
      // Predicated region
      $region13: #{transfer_conv_forward.3} parent=11 // pred_check
        %p134 = pneg %p70
      $region14: #{transfer_conv_forward.3} parent=11 // pred_check_branch
        %136 = sbr.rel (%p134) target = $region16
      $region15: #{transfer_conv_forward.3} parent=11 // pred_region
        _
      $region16: #{transfer_conv_forward.3} parent=11 // pred_fallthru
        _
      // Predicated region
      $region17: #{transfer_conv_forward.3} parent=11 // pred_check
        %p137 = pneg %p91
      $region18: #{transfer_conv_forward.3} parent=11 // pred_check_branch
        %139 = sbr.rel (%p137) target = $region20
      $region19: #{transfer_conv_forward.3} parent=11 // pred_region
        _
      $region20: #{transfer_conv_forward.3} parent=11 // pred_fallthru
        _
    $region12: #{transfer_conv_forward.3} parent=5 // pred_fallthru
      _
    %p140 = scmp.lt.s32.totalorder %s9, 2
    // Predicated region
    $region21: #{transfer_conv_forward.3} parent=5 // pred_check
      %p141 = pneg %p140
    $region22: #{transfer_conv_forward.3} parent=5 // pred_check_branch
      %143 = sbr.rel (%p141) target = $region24
    $region23: #{transfer_conv_forward.3} parent=5 // pred_region
      // Predicated region
      $region25: #{transfer_conv_forward.3} parent=23 // pred_check
        %p144 = pneg %p43
      $region26: #{transfer_conv_forward.3} parent=23 // pred_check_branch
        %146 = sbr.rel (%p144) target = $region28
      $region27: #{transfer_conv_forward.3} parent=23 // pred_region
        %s147 = smul.u32 2, %s17
        %p148 = scmp.lt.s32.totalorder %s16, 1
        %s149 = scalar_select %p148, %s16, 1
        %p150 = scmp.lt.s32.totalorder %s147, 1
        %s151 = scalar_select %p150, %s147, 1
        %s152 = smul.addr %s149, 2
        %s153 = sadd.s32 %s151, %s152
        %s154 = smul.addr %s153, 4
        %s155 = scalar_lea.vmem %s0, %s154
        %s156 = smul.u32 2, %s17
      $region28: #{transfer_conv_forward.3} parent=23 // pred_fallthru
        _
    $region24: #{transfer_conv_forward.3} parent=5 // pred_fallthru
      _
    %p157 = scmp.le.s32.totalorder 1, %s9
    %p158 = scmp.lt.s32.totalorder %s9, 3
    %p159 = pnand %p157, %p158
    %p160 = pneg %p159
    // Predicated region
    $region29: #{transfer_conv_forward.3} parent=5 // pred_check
      _
    $region30: #{transfer_conv_forward.3} parent=5 // pred_check_branch
      %162 = sbr.rel (%p159) target = $region32
    $region31: #{transfer_conv_forward.3} parent=5 // pred_region
      %s163 = ssub.s32 %s9, 1
      %s164 = smul.u32 2, %s19
      %p165 = scmp.lt.s32.totalorder %s18, 1
      %s166 = scalar_select %p165, %s18, 1
      %p167 = scmp.lt.s32.totalorder %s164, 1
      %s168 = scalar_select %p167, %s164, 1
      %s169 = smul.addr %s166, 2
      %s170 = sadd.s32 %s168, %s169
      %s171 = smul.addr %s170, 4
      %s172 = scalar_lea.vmem %s0, %s171
      %p173 = pneg %p49
      %p174 = pneg %p46
      %p175 = pneg %p70
      %p176 = pneg %p67
      %p177 = pneg %p91
      %p178 = pneg %p88
      %p179 = pneg %p119
      %p180 = pneg %p116
      %s181 = smul.u32 2, %s19
      %p182 = scmp.lt.s32.totalorder %s18, 1
      %s183 = scalar_select %p182, %s18, 1
      %p184 = scmp.lt.s32.totalorder %s181, 1
      %s185 = scalar_select %p184, %s181, 1
      %s186 = smul.addr %s183, 2
      %s187 = sadd.s32 %s185, %s186
      %s188 = smul.addr %s187, 8
      %s189 = scalar_lea.vmem %s3, %s188
      %s190 = smul.u32 2, %s19
      %p191 = scmp.lt.s32.totalorder %s18, 1
      %s192 = scalar_select %p191, %s18, 1
      %p193 = scmp.lt.s32.totalorder %s190, 1
      %s194 = scalar_select %p193, %s190, 1
      %s195 = smul.addr %s192, 2
      %s196 = sadd.s32 %s194, %s195
      %s197 = smul.addr %s196, 4
      %s198 = scalar_lea.vmem %s0, %s197
      %s199 = smul.u32 2, %s19
      %s200 = smul.u32 2, %s19
      %p201 = scmp.lt.s32.totalorder %s18, 1
      %s202 = scalar_select %p201, %s18, 1
      %p203 = scmp.lt.s32.totalorder %s200, 1
      %s204 = scalar_select %p203, %s200, 1
      %s205 = smul.addr %s202, 2
      %s206 = sadd.s32 %s204, %s205
      %s207 = smul.addr %s206, 8
      %s208 = scalar_lea.vmem %s3, %s207
      %s209 = smul.u32 2, %s19
      %v210 = vld [vmem:[%s198] sm:$0xff]
      %v211 = vld [vmem:[%s1] sm:$0xff]
      %v212 = vld [vmem:[%s2] sm:$0xff]
      %214 = vset.pattern.permute.xlu0 0
      %215 = vperm.xlu0 %214, %v212
      %v216 = vpop.permute.xlu0 %215
      %v219 = vcombine.high %v210, %v210
      %vm220 = vcmask 31744
      %v222 = vsel %vm220, %v211, 0
      %vm224 = vcmask 1043456
      %v225 = vsel %vm224, %v210, 0
      %v227 = vsel %vm224, %v219, 0
      %229 = vmatprep.subr.mxu0 0.0
      %230 = vmatpush1.msra.mxu0 0.0
      %231 = vmatprep.subr.mxu0 0.0
      %232 = vmatpush1.msra.mxu0 0.0
      %233 = vmatprep.subr.mxu0 0.0
      %234 = vmatpush1.msra.mxu0 0.0
      %235 = vmatprep.subr.mxu0 0.0
      %236 = vmatpush1.msra.mxu0 0.0
      %237 = vmatprep.subr.mxu0 0.0
      %238 = vmatpush1.msra.mxu0 0.0
      %239 = vmatprep.subr.mxu0 0.0
      %240 = vmatpush1.msra.mxu0 0.0
      %241 = vmatprep.subr.mxu0 0.0
      %242 = vmatpush1.msra.mxu0 0.0
      %243 = vmatprep.subr.mxu0 0.0
      %244 = vmatpush1.msra.mxu0 0.0
      %245 = vmatprep.subr.mxu0 0.0
      %246 = vmatpush1.msra.mxu0 0.0
      %247 = vmatprep.subr.mxu0 0.0
      %248 = vmatpush1.msra.mxu0 0.0
      %249 = vmatprep.subr.mxu0 0.0
      %250 = vmatpush1.msra.mxu0 0.0
      %251 = vmatprep.subr.mxu0 0.0
      %252 = vmatpush1.msra.mxu0 0.0
      %253 = vmatprep.subr.mxu0 0.0
      %254 = vmatpush1.msra.mxu0 0.0
      %255 = vmatprep.subr.mxu0 0.0
      %256 = vmatpush1.msra.mxu0 0.0
      %257 = vmatprep.subr.mxu0 0.0
      %258 = vmatpush1.msra.mxu0 0.0
      %259 = vmatprep.subr.mxu0 %v227
      %260 = vmatpush1.msra.mxu0 %v225
      %261 = vmatprep.subr.mxu0 0.0
      %262 = vmatpush2.msra.mxu0 0.0
      %263 = vmatprep.subr.mxu0 0.0
      %264 = vmatpush2.msra.mxu0 0.0
      %265 = vmatprep.subr.mxu0 0.0
      %266 = vmatpush2.msra.mxu0 0.0
      %267 = vmatprep.subr.mxu0 0.0
      %268 = vmatpush2.msra.mxu0 0.0
      %269 = vmatprep.subr.mxu0 0.0
      %270 = vmatpush2.msra.mxu0 0.0
      %271 = vmatprep.subr.mxu0 0.0
      %272 = vmatpush2.msra.mxu0 0.0
      %273 = vmatprep.subr.mxu0 0.0
      %274 = vmatpush2.msra.mxu0 0.0
      %275 = vmatprep.subr.mxu0 0.0
      %276 = vmatpush2.msra.mxu0 0.0
      %277 = vmatprep.subr.mxu0 0.0
      %278 = vmatpush2.msra.mxu0 0.0
      %279 = vmatprep.subr.mxu0 0.0
      %280 = vmatpush2.msra.mxu0 0.0
      %281 = vmatprep.subr.mxu0 0.0
      %282 = vmatpush2.msra.mxu0 0.0
      %283 = vmatprep.subr.mxu0 0.0
      %284 = vmatpush2.msra.mxu0 0.0
      %285 = vmatprep.subr.mxu0 0.0
      %286 = vmatpush2.msra.mxu0 0.0
      %287 = vmatprep.subr.mxu0 0.0
      %288 = vmatpush2.msra.mxu0 0.0
      %289 = vmatprep.subr.mxu0 0.0
      %290 = vmatpush2.msra.mxu0 0.0
      %291 = vmatprep.subr.mxu0 0.0
      %292 = vmatpush2.msra.mxu0 0.0
      %293 = vmatprep.mubr.f32.mxu0 0.0
      %294 = vmatmul.mubr.f32.gmra.mxu0 %v222
      %v295 = vpop.f32.mrf.mxu0
      %v296 = vadd.f32 %v216, %v295
      %v297 = vpop.f32.mrf.mxu0
      %v298 = vadd.f32 %v216, %v297
      %299 = vdwg.mxu0
      %v300 = vmax.f32 %v296, 0.0
      %v301 = vmax.f32 %v298, 0.0
      %302 = vst [vmem:[%s208] sm:$0xff] %v300
      %303 = vst [vmem:[%s208 + $0x8] sm:$0xff] %v301
      %s304 = smul.u32 2, %s19
      %p305 = scmp.lt.s32.totalorder %s18, 1
      %s306 = scalar_select %p305, %s18, 1
      %p307 = scmp.lt.s32.totalorder %s304, 1
      %s308 = scalar_select %p307, %s304, 1
      %s309 = smul.addr %s306, 2
      %s310 = sadd.s32 %s308, %s309
      %s311 = smul.addr %s310, 8
      %s312 = scalar_lea.vmem %s3, %s311
      // Predicated region
      $region33: #{transfer_conv_forward.3} parent=31 // pred_check
        %p313 = pneg %p116
      $region34: #{transfer_conv_forward.3} parent=31 // pred_check_branch
        %315 = sbr.rel (%p313) target = $region36
      $region35: #{transfer_conv_forward.3} parent=31 // pred_region
        %s316 = smul.u32 2, %s19
      $region36: #{transfer_conv_forward.3} parent=31 // pred_fallthru
        _
    $region32: #{transfer_conv_forward.3} parent=5 // pred_fallthru
      _
    %p317 = scmp.le.s32.totalorder 2, %s9
    // Predicated region
    $region37: #{transfer_conv_forward.3} parent=5 // pred_check
      %p318 = pneg %p317
    $region38: #{transfer_conv_forward.3} parent=5 // pred_check_branch
      %320 = sbr.rel (%p318) target = $region40
    $region39: #{transfer_conv_forward.3} parent=5 // pred_region
      %s321 = ssub.s32 %s9, 2
      // Predicated region
      $region41: #{transfer_conv_forward.3} parent=39 // pred_check
        %p322 = pneg %p122
      $region42: #{transfer_conv_forward.3} parent=39 // pred_check_branch
        %324 = sbr.rel (%p322) target = $region44
      $region43: #{transfer_conv_forward.3} parent=39 // pred_region
        %s325 = smul.u32 2, %s21
        %p326 = scmp.lt.s32.totalorder %s20, 1
        %s327 = scalar_select %p326, %s20, 1
        %p328 = scmp.lt.s32.totalorder %s325, 1
        %s329 = scalar_select %p328, %s325, 1
        %s330 = smul.addr %s327, 2
        %s331 = sadd.s32 %s329, %s330
        %s332 = smul.addr %s331, 8
        %s333 = scalar_lea.vmem %s3, %s332
      $region44: #{transfer_conv_forward.3} parent=39 // pred_fallthru
        _
    $region40: #{transfer_conv_forward.3} parent=5 // pred_fallthru
      _
  $region6: #{transfer_conv_forward.3} parent=0 // loop_footer
    %s13 = sadd.s32 1, %s9
  $region7: #{transfer_conv_forward.3} parent=0 // loop_footer_branch
    %8 = sbr.rel target = $region3
  $region8: #{transfer_conv_forward.3} parent=0 // loop_exit
    _

</llo_original>
